<compile_context>
chip_gen: v7x
topology: tpu7x:2x2x1
jax: 0.10.0
libtpu: 0.0.40
codegen_flags: <defaults>
</compile_context>

<pallas_src>
import jax
import jax.numpy as jnp
from jax.experimental import pallas as pl
from jax.experimental.pallas import tpu as pltpu

BOTTLENECK1 = 20
BOTTLENECK2 = 15
NUM_CLASSES = 10
LANE = 128                          # TPU lane width: narrow dims padded to this
VMEM_BUDGET_BYTES = 20 * 1024 * 1024  # x/out double buffers + resident weights
VMEM_LIMIT_BYTES = 32 * 1024 * 1024   # safe on v5e/v6e/v7x
MAX_TILE_B = 8192


def _round_up(x, m):
    return ((x + m - 1) // m) * m


def _cdiv(a, b):
    return -(-a // b)


def _pad_to(a, rows, cols):
    r, c = a.shape
    return jnp.pad(a, ((0, rows - r), (0, cols - c)))


def _mlp_kernel(x_ref, w1_ref, w2_ref, w3_ref, o_ref):
    # fc1 + ReLU  (MXU dot accumulates in f32; ReLU kept in f32 -> v5e-safe)
    h1 = jnp.dot(x_ref[...], w1_ref[...], preferred_element_type=jnp.float32)
    h1 = jnp.maximum(h1, 0.0).astype(w2_ref.dtype)
    # fc2 + ReLU
    h2 = jnp.dot(h1, w2_ref[...], preferred_element_type=jnp.float32)
    h2 = jnp.maximum(h2, 0.0).astype(w3_ref.dtype)
    # fc3 (no activation) -> lane-dense (tile_b, 128) output block
    o_ref[...] = jnp.dot(
        h2, w3_ref[...], preferred_element_type=jnp.float32
    ).astype(o_ref.dtype)


def _pick_tile(batch_aligned, d_in, row_align, in_itemsize, out_itemsize):
    """VMEM-budget-derived batch tile; ensures >=2 grid steps when possible."""
    weight_bytes = 2 * (d_in * LANE + 2 * LANE * LANE) * in_itemsize  # dbl-buf
    per_row = 2 * (d_in * in_itemsize + LANE * out_itemsize)          # x + out
    cap = (VMEM_BUDGET_BYTES - weight_bytes) // per_row
    cap = max(row_align, min(MAX_TILE_B, (cap // row_align) * row_align))
    # >=2 tiles so v7x's 2 TensorCores both get work (when batch allows it).
    min_tiles = 2 if batch_aligned >= 2 * row_align else 1
    n_tiles = max(_cdiv(batch_aligned, cap), min_tiles)
    return _round_up(_cdiv(batch_aligned, n_tiles), row_align)


def simple_nn_forward(x, w1, w2, w3, *, compute_dtype=jnp.float32, tile_b=None):
    """x: (B, res, res).  w's: (in, out) = transposed nn.Linear weights.
    Returns (B, 10) float32 = relu(relu(x@w1)@w2)@w3.  Operands are cast to
    compute_dtype (bf16 opt-in quantizes the inputs); accumulation & ReLU
    always run in f32."""
    B = x.shape[0]
    x_flat = x.reshape(B, -1)                                # nn.Flatten
    if x_flat.dtype != compute_dtype:
        x_flat = x_flat.astype(compute_dtype)                # fused via
    d_in = x_flat.shape[1]                                   # allow_input_fusion

    in_itemsize = jnp.dtype(compute_dtype).itemsize
    out_dtype = jnp.float32 if in_itemsize >= 4 else compute_dtype
    out_itemsize = jnp.dtype(out_dtype).itemsize
    # Sublane alignment: 8 rows for 32-bit, 16 for bf16, 32 for 8-bit packing.
    row_align = {4: 8, 2: 16, 1: 32}.get(in_itemsize, 8)

    # Lane-dense weights: zero-pad narrow dims (20/15/10) up to 128 lanes.
    w1p = _pad_to(w1.astype(compute_dtype), d_in, LANE)      # (d_in, 128)
    w2p = _pad_to(w2.astype(compute_dtype), LANE, LANE)      # (128, 128)
    w3p = _pad_to(w3.astype(compute_dtype), LANE, LANE)      # (128, 128)

    b_aligned = _round_up(B, row_align)
    if tile_b is None:
        tile = _pick_tile(b_aligned, d_in, row_align, in_itemsize, out_itemsize)
    else:
        tile = max(row_align, min(_round_up(tile_b, row_align), b_aligned))
    grid_b = _cdiv(b_aligned, tile)
    b_pad = grid_b * tile

    if b_pad != B:  # pad only when strictly needed (also fusable)
        x_flat = jnp.pad(x_flat, ((0, b_pad - B), (0, 0)))

    cost = pl.CostEstimate(
        flops=2 * b_pad * (d_in * LANE + LANE * LANE + LANE * LANE),
        transcendentals=0,
        bytes_accessed=int(
            b_pad * d_in * in_itemsize                        # x stream
            + (d_in * LANE + 2 * LANE * LANE) * in_itemsize   # weights (once)
            + b_pad * LANE * out_itemsize),                   # output stream
    )

    out_pad = pl.pallas_call(
        _mlp_kernel,
        out_shape=jax.ShapeDtypeStruct((b_pad, LANE), out_dtype),
        grid=(grid_b,),
        in_specs=[
            pl.BlockSpec((tile, d_in), lambda i: (i, 0)),     # x: batch-tiled
            pl.BlockSpec((d_in, LANE), lambda i: (0, 0)),     # weights resident
            pl.BlockSpec((LANE, LANE), lambda i: (0, 0)),
            pl.BlockSpec((LANE, LANE), lambda i: (0, 0)),
        ],
        out_specs=pl.BlockSpec((tile, LANE), lambda i: (i, 0)),
        compiler_params=pltpu.CompilerParams(
            dimension_semantics=("parallel",),   # v7x: shard batch over 2 TCs
            vmem_limit_bytes=VMEM_LIMIT_BYTES,
            allow_input_fusion=[True, True, True, True],  # fuse flatten/cast/pad
        ),
        cost_estimate=cost,
    )(x_flat, w1p, w2p, w3p)

    return out_pad[:B, :NUM_CLASSES].astype(jnp.float32)


def init_params(key, res):
    """Kaiming-normal (fan_in, relu gain) init, matching
    nn.init.kaiming_normal_(weight, nonlinearity='relu') on each bias-free
    nn.Linear.  Weights returned already transposed to (in, out)."""
    d_in = res * res
    k1, k2, k3 = jax.random.split(key, 3)

    def kaiming(k, fan_in, fan_out):
        std = jnp.sqrt(2.0 / fan_in)
        # PyTorch draws weight of shape (out, in); draw the same and transpose.
        w = jax.random.normal(k, (fan_out, fan_in), dtype=jnp.float32) * std
        return w.T  # (in, out)

    w1 = kaiming(k1, d_in, BOTTLENECK1)
    w2 = kaiming(k2, BOTTLENECK1, BOTTLENECK2)
    w3 = kaiming(k3, BOTTLENECK2, NUM_CLASSES)
    return w1, w2, w3


def _reference(x, w1, w2, w3, compute_dtype=jnp.float32):
    xf = x.reshape(x.shape[0], -1).astype(compute_dtype)
    h = jnp.maximum(jnp.dot(xf, w1.astype(compute_dtype),
                            preferred_element_type=jnp.float32), 0.0)
    h = jnp.maximum(jnp.dot(h.astype(compute_dtype), w2.astype(compute_dtype),
                            preferred_element_type=jnp.float32), 0.0)
    return jnp.dot(h.astype(compute_dtype), w3.astype(compute_dtype),
                   preferred_element_type=jnp.float32)


if __name__ == "__main__":
    res = 16
    batch = 4

    key = jax.random.PRNGKey(0)
    k_x, k_p, k_x2, k_x3 = jax.random.split(key, 4)

    x = jax.random.normal(k_x, (batch, res, res), dtype=jnp.float32)
    w1, w2, w3 = init_params(k_p, res)
    ref = _reference(x, w1, w2, w3)

    # f32 path, small batch (auto tile -> single small tile).
    out = jax.block_until_ready(simple_nn_forward(x, w1, w2, w3))
    assert out.shape == (batch, NUM_CLASSES)
    assert jnp.allclose(out, ref, atol=1e-4, rtol=1e-4)

    # f32 path, explicit small tile exercising multi-step grid + tail padding.
    x2 = jax.random.normal(k_x2, (20, res, res), dtype=jnp.float32)
    out2 = jax.block_until_ready(simple_nn_forward(x2, w1, w2, w3, tile_b=8))
    ref2 = _reference(x2, w1, w2, w3)
    assert out2.shape == (20, NUM_CLASSES)
    assert jnp.allclose(out2, ref2, atol=1e-4, rtol=1e-4)

    # f32 path, auto tiling with a larger batch (>= 2 grid steps, no tail pad).
    x3 = jax.random.normal(k_x3, (304, res, res), dtype=jnp.float32)
    out3 = jax.block_until_ready(simple_nn_forward(x3, w1, w2, w3))
    ref3 = _reference(x3, w1, w2, w3)
    assert out3.shape == (304, NUM_CLASSES)
    assert jnp.allclose(out3, ref3, atol=1e-4, rtol=1e-4)

    # bf16-operand path (halves x read + output writeback; f32 accumulation).
    out_bf16 = jax.block_until_ready(
        simple_nn_forward(x, w1, w2, w3, compute_dtype=jnp.bfloat16))
    assert jnp.allclose(out_bf16, ref, atol=1e-1, rtol=1e-1)

    # bf16 multi-tile path (16-row-aligned tiles, 3 grid steps, tail padding).
    x4 = jax.random.normal(k_x2, (36, res, res), dtype=jnp.float32)
    out4 = jax.block_until_ready(
        simple_nn_forward(x4, w1, w2, w3, compute_dtype=jnp.bfloat16, tile_b=16))
    ref4 = _reference(x4, w1, w2, w3)
    assert out4.shape == (36, NUM_CLASSES)
    assert jnp.allclose(out4, ref4, atol=1e-1, rtol=1e-1)

    print("KERNEL_OK")
</pallas_src>

<mosaic_0001>
module attributes {stable_mosaic.version = 11 : i64} {
  func.func @_mlp_kernel(%arg0: i32, %arg1: memref<8x256xf32, #tpu.memory_space<vmem>>, %arg2: memref<256x128xf32, #tpu.memory_space<vmem>>, %arg3: memref<128x128xf32, #tpu.memory_space<vmem>>, %arg4: memref<128x128xf32, #tpu.memory_space<vmem>>, %arg5: memref<8x128xf32, #tpu.memory_space<vmem>>) attributes {dimension_semantics = [#tpu.dimension_semantics<parallel>], iteration_bounds = array<i64: 1>, scalar_prefetch = 0 : i64, scratch_operands = 0 : i64, tpu.core_type = #tpu.core_type<tc>, window_params = [{transform_indices = @transform_0, window_bounds = array<i64: 8, 256>}, {pipeline_mode = #tpu.pipeline_mode<synchronous>, transform_indices = @transform_1, window_bounds = array<i64: 256, 128>}, {pipeline_mode = #tpu.pipeline_mode<synchronous>, transform_indices = @transform_2, window_bounds = array<i64: 128, 128>}, {pipeline_mode = #tpu.pipeline_mode<synchronous>, transform_indices = @transform_3, window_bounds = array<i64: 128, 128>}, {transform_indices = @transform_4, window_bounds = array<i64: 8, 128>}]} {
    %c0 = arith.constant 0 : index
    %c0_0 = arith.constant 0 : index
    %0 = vector.load %arg1[%c0, %c0_0] : memref<8x256xf32, #tpu.memory_space<vmem>>, vector<8x256xf32>
    %c0_1 = arith.constant 0 : index
    %c0_2 = arith.constant 0 : index
    %1 = vector.load %arg2[%c0_1, %c0_2] : memref<256x128xf32, #tpu.memory_space<vmem>>, vector<256x128xf32>
    %cst = arith.constant dense<0.000000e+00> : vector<8x128xf32>
    %2 = tpu.matmul %0, %1, %cst {dimension_numbers = #tpu.dot_dimension_numbers<[1], [0], [0], [1], [0, 0, 1, 1], [], []>} : vector<8x256xf32>, vector<256x128xf32>, vector<8x128xf32> -> vector<8x128xf32>
    %cst_3 = arith.constant 0.000000e+00 : f32
    %3 = vector.broadcast %cst_3 : f32 to vector<8x128xf32>
    %4 = arith.maximumf %2, %3 : vector<8x128xf32>
    %c0_4 = arith.constant 0 : index
    %c0_5 = arith.constant 0 : index
    %5 = vector.load %arg3[%c0_4, %c0_5] : memref<128x128xf32, #tpu.memory_space<vmem>>, vector<128x128xf32>
    %cst_6 = arith.constant dense<0.000000e+00> : vector<8x128xf32>
    %6 = tpu.matmul %4, %5, %cst_6 {dimension_numbers = #tpu.dot_dimension_numbers<[1], [0], [0], [1], [0, 0, 1, 1], [], []>} : vector<8x128xf32>, vector<128x128xf32>, vector<8x128xf32> -> vector<8x128xf32>
    %cst_7 = arith.constant 0.000000e+00 : f32
    %7 = vector.broadcast %cst_7 : f32 to vector<8x128xf32>
    %8 = arith.maximumf %6, %7 : vector<8x128xf32>
    %c0_8 = arith.constant 0 : index
    %c0_9 = arith.constant 0 : index
    %9 = vector.load %arg4[%c0_8, %c0_9] : memref<128x128xf32, #tpu.memory_space<vmem>>, vector<128x128xf32>
    %cst_10 = arith.constant dense<0.000000e+00> : vector<8x128xf32>
    %10 = tpu.matmul %8, %9, %cst_10 {dimension_numbers = #tpu.dot_dimension_numbers<[1], [0], [0], [1], [0, 0, 1, 1], [], []>} : vector<8x128xf32>, vector<128x128xf32>, vector<8x128xf32> -> vector<8x128xf32>
    %c0_11 = arith.constant 0 : index
    %c0_12 = arith.constant 0 : index
    %11 = vector.load %arg5[%c0_11, %c0_12] : memref<8x128xf32, #tpu.memory_space<vmem>>, vector<8x128xf32>
    tpu.vector_store %arg5[%c0_11, %c0_12], %10 {strides = array<i32>} : memref<8x128xf32, #tpu.memory_space<vmem>>, vector<8x128xf32>,
    return
  }
  func.func @transform_0(%arg0: i32) -> (i32, i32) {
    %c0_i32 = arith.constant 0 : i32
    %c0_i32_0 = arith.constant 0 : i32
    return %arg0, %c0_i32 : i32, i32
  }
  func.func @transform_1(%arg0: i32) -> (i32, i32) {
    %c0_i32 = arith.constant 0 : i32
    %c0_i32_0 = arith.constant 0 : i32
    %c0_i32_1 = arith.constant 0 : i32
    return %c0_i32, %c0_i32_0 : i32, i32
  }
  func.func @transform_2(%arg0: i32) -> (i32, i32) {
    %c0_i32 = arith.constant 0 : i32
    %c0_i32_0 = arith.constant 0 : i32
    %c0_i32_1 = arith.constant 0 : i32
    return %c0_i32, %c0_i32_0 : i32, i32
  }
  func.func @transform_3(%arg0: i32) -> (i32, i32) {
    %c0_i32 = arith.constant 0 : i32
    %c0_i32_0 = arith.constant 0 : i32
    %c0_i32_1 = arith.constant 0 : i32
    return %c0_i32, %c0_i32_0 : i32, i32
  }
  func.func @transform_4(%arg0: i32) -> (i32, i32) {
    %c0_i32 = arith.constant 0 : i32
    %c0_i32_0 = arith.constant 0 : i32
    return %arg0, %c0_i32 : i32, i32
  }
}

</mosaic_0001>

<llo_original>
// kernel: tpu_custom_call.1
$region0: #{tpu_custom_call.1}
  #allocation0 [shape = 'u32[]', space=smem, size = 0x4, offset = 0x4, fixed_abs, tag = 'smem constant byte address 0x4 - core index']
  #allocation1 [shape = 'u32[144,128]{1,0:T(1,128)}', space=vmem, size = 0x12000, scoped, tag = 'internal scratch']
  %s0 = inlined_call_operand.hbm [shape: f32[8,256], index: 0, kind: input, shape index: {}]
  %s1 = inlined_call_operand.hbm [shape: f32[256,128], index: 1, kind: input, shape index: {}]
  %s2 = inlined_call_operand.hbm [shape: f32[128,128], index: 2, kind: input, shape index: {}]
  %s3 = inlined_call_operand.hbm [shape: f32[128,128], index: 3, kind: input, shape index: {}]
  %s4 = inlined_call_operand.hbm [shape: f32[8,128], index: 4, kind: output, shape index: {}]
  %s5 = sld [smem:[#allocation0]]
  $region42: #{tpu_custom_call.1} parent=0
    _
  %s7 = ssub.s32 1, %s5
  %s8 = scalar_select 0, %s7, %s5
  $region1: #{tpu_custom_call.1} parent=0
    #allocation2 [shape = 'u8[8192]{0}', space=vmem, size = 0x2000, scoped, tag = 'input window, operand 0, single buffered']
    #allocation3 [shape = 's32[1]{0}', space=sflag, size = 0x4, scoped, tag = 'scoped memory for tpu_custom_call.1']
    #allocation4 [shape = 's32[1]{0}', space=sflag, size = 0x4, scoped, tag = 'scoped memory for tpu_custom_call.1']
    #allocation5 [shape = 'u8[131072]{0}', space=vmem, size = 0x20000, scoped, tag = 'input window, operand 1, single buffered']
    #allocation6 [shape = 's32[1]{0}', space=sflag, size = 0x4, scoped, tag = 'scoped memory for tpu_custom_call.1']
    #allocation7 [shape = 'u8[65536]{0}', space=vmem, size = 0x10000, scoped, tag = 'input window, operand 2, single buffered']
    #allocation8 [shape = 'u8[65536]{0}', space=vmem, size = 0x10000, scoped, tag = 'input window, operand 3, single buffered']
    #allocation9 [shape = 's32[1]{0}', space=sflag, size = 0x4, scoped, tag = 'scoped memory for tpu_custom_call.1']
    #allocation10 [shape = 'u8[4096]{0}', space=vmem, size = 0x1000, scoped, tag = 'output window, operand 0, single buffered']
    %9 = vsyncpa [#allocation3], 0
    %10 = vsyncpa [#allocation6], 0
    %11 = vsyncpa [#allocation9], 0
    %12 = vsyncpa [#allocation4], 0
    // Predicated region
    $region2: #{tpu_custom_call.1} parent=1 // pred_check
      _
    $region3: #{tpu_custom_call.1} parent=1 // pred_check_branch
      %14 = sbr.rel (0) target = $region5
    $region4: #{tpu_custom_call.1} parent=1 // pred_region
      %s16 = ssub.s32 256, 256
      %17 = vsyncadd [#allocation3], %s16
      %s19 = sshll.u32 [#allocation2], 4
      %s20 = int_to_ptr.vmem [resolvable:$true] %s19
      %22 = dma.hbm_to_vmem [thread:$0]  %s0, 256, %s20, [#allocation3]
    $region5: #{tpu_custom_call.1} parent=1 // pred_fallthru
      _
    // Predicated region
    $region6: #{tpu_custom_call.1} parent=1 // pred_check
      _
    $region7: #{tpu_custom_call.1} parent=1 // pred_check_branch
      %24 = sbr.rel (0) target = $region9
    $region8: #{tpu_custom_call.1} parent=1 // pred_region
      %s26 = ssub.s32 4096, 4096
      %27 = vsyncadd [#allocation6], %s26
      %s28 = sshll.u32 [#allocation5], 4
      %s29 = int_to_ptr.vmem [resolvable:$true] %s28
      %34 = dma.hbm_to_vmem [thread:$0]  %s1, 4096, %s29, [#allocation6], 128, 128, 8
    $region9: #{tpu_custom_call.1} parent=1 // pred_fallthru
      _
    // Predicated region
    $region10: #{tpu_custom_call.1} parent=1 // pred_check
      _
    $region11: #{tpu_custom_call.1} parent=1 // pred_check_branch
      %36 = sbr.rel (0) target = $region13
    $region12: #{tpu_custom_call.1} parent=1 // pred_region
      %s38 = ssub.s32 2048, 2048
      %39 = vsyncadd [#allocation6], %s38
      %s40 = sshll.u32 [#allocation7], 4
      %s41 = int_to_ptr.vmem [resolvable:$true] %s40
      %46 = dma.hbm_to_vmem [thread:$0]  %s2, 2048, %s41, [#allocation6], 128, 128, 8
    $region13: #{tpu_custom_call.1} parent=1 // pred_fallthru
      _
    // Predicated region
    $region14: #{tpu_custom_call.1} parent=1 // pred_check
      _
    $region15: #{tpu_custom_call.1} parent=1 // pred_check_branch
      %48 = sbr.rel (0) target = $region17
    $region16: #{tpu_custom_call.1} parent=1 // pred_region
      %s50 = ssub.s32 2048, 2048
      %51 = vsyncadd [#allocation9], %s50
      %s52 = sshll.u32 [#allocation8], 4
      %s53 = int_to_ptr.vmem [resolvable:$true] %s52
      %58 = dma.hbm_to_vmem [thread:$0]  %s3, 2048, %s53, [#allocation9], 128, 128, 8
    $region17: #{tpu_custom_call.1} parent=1 // pred_fallthru
      _
    // Predicated region
    $region18: #{tpu_custom_call.1} parent=1 // pred_check
      _
    $region19: #{tpu_custom_call.1} parent=1 // pred_check_branch
      %60 = sbr.rel (0) target = $region21
    $region20: #{tpu_custom_call.1} parent=1 // pred_region
      %61 = dma.done [#allocation3], 256
    $region21: #{tpu_custom_call.1} parent=1 // pred_fallthru
      _
    // Predicated region
    $region22: #{tpu_custom_call.1} parent=1 // pred_check
      _
    $region23: #{tpu_custom_call.1} parent=1 // pred_check_branch
      %63 = sbr.rel (0) target = $region25
    $region24: #{tpu_custom_call.1} parent=1 // pred_region
      %64 = dma.done [#allocation6], 4096
    $region25: #{tpu_custom_call.1} parent=1 // pred_fallthru
      _
    // Predicated region
    $region26: #{tpu_custom_call.1} parent=1 // pred_check
      _
    $region27: #{tpu_custom_call.1} parent=1 // pred_check_branch
      %66 = sbr.rel (0) target = $region29
    $region28: #{tpu_custom_call.1} parent=1 // pred_region
      %67 = dma.done [#allocation6], 2048
    $region29: #{tpu_custom_call.1} parent=1 // pred_fallthru
      _
    // Predicated region
    $region30: #{tpu_custom_call.1} parent=1 // pred_check
      _
    $region31: #{tpu_custom_call.1} parent=1 // pred_check_branch
      %69 = sbr.rel (0) target = $region33
    $region32: #{tpu_custom_call.1} parent=1 // pred_region
      %70 = dma.done [#allocation9], 2048
    $region33: #{tpu_custom_call.1} parent=1 // pred_fallthru
      _
    %v71 = vld [vmem:[#allocation2] sm:$0xff]
    %v72 = vld [vmem:[#allocation2 + $0x8] sm:$0xff]
    %v73 = vld [vmem:[#allocation5] sm:$0xff]
    %v74 = vld [vmem:[#allocation5 + $0x8] sm:$0xff]
    %v75 = vld [vmem:[#allocation5 + $0x10] sm:$0xff]
    %v76 = vld [vmem:[#allocation5 + $0x18] sm:$0xff]
    %v77 = vld [vmem:[#allocation5 + $0x20] sm:$0xff]
    %v78 = vld [vmem:[#allocation5 + $0x28] sm:$0xff]
    %v79 = vld [vmem:[#allocation5 + $0x30] sm:$0xff]
    %v80 = vld [vmem:[#allocation5 + $0x38] sm:$0xff]
    %v81 = vld [vmem:[#allocation5 + $0x40] sm:$0xff]
    %v82 = vld [vmem:[#allocation5 + $0x48] sm:$0xff]
    %v83 = vld [vmem:[#allocation5 + $0x50] sm:$0xff]
    %v84 = vld [vmem:[#allocation5 + $0x58] sm:$0xff]
    %v85 = vld [vmem:[#allocation5 + $0x60] sm:$0xff]
    %v86 = vld [vmem:[#allocation5 + $0x68] sm:$0xff]
    %v87 = vld [vmem:[#allocation5 + $0x70] sm:$0xff]
    %v88 = vld [vmem:[#allocation5 + $0x78] sm:$0xff]
    %v89 = vld [vmem:[#allocation5 + $0x80] sm:$0xff]
    %v90 = vld [vmem:[#allocation5 + $0x88] sm:$0xff]
    %v91 = vld [vmem:[#allocation5 + $0x90] sm:$0xff]
    %v92 = vld [vmem:[#allocation5 + $0x98] sm:$0xff]
    %v93 = vld [vmem:[#allocation5 + $0xa0] sm:$0xff]
    %v94 = vld [vmem:[#allocation5 + $0xa8] sm:$0xff]
    %v95 = vld [vmem:[#allocation5 + $0xb0] sm:$0xff]
    %v96 = vld [vmem:[#allocation5 + $0xb8] sm:$0xff]
    %v97 = vld [vmem:[#allocation5 + $0xc0] sm:$0xff]
    %v98 = vld [vmem:[#allocation5 + $0xc8] sm:$0xff]
    %v99 = vld [vmem:[#allocation5 + $0xd0] sm:$0xff]
    %v100 = vld [vmem:[#allocation5 + $0xd8] sm:$0xff]
    %v101 = vld [vmem:[#allocation5 + $0xe0] sm:$0xff]
    %v102 = vld [vmem:[#allocation5 + $0xe8] sm:$0xff]
    %v103 = vld [vmem:[#allocation5 + $0xf0] sm:$0xff]
    %v104 = vld [vmem:[#allocation5 + $0xf8] sm:$0xff]
    %105 = vmatprep.subr.mxu0 0.0
    %106 = vmatpush1.msra.mxu0 %v73
    %107 = vmatprep.subr.mxu0 0.0
    %108 = vmatpush1.msra.mxu0 %v74
    %109 = vmatprep.subr.mxu0 0.0
    %110 = vmatpush1.msra.mxu0 %v75
    %111 = vmatprep.subr.mxu0 0.0
    %112 = vmatpush1.msra.mxu0 %v76
    %113 = vmatprep.subr.mxu0 0.0
    %114 = vmatpush1.msra.mxu0 %v77
    %115 = vmatprep.subr.mxu0 0.0
    %116 = vmatpush1.msra.mxu0 %v78
    %117 = vmatprep.subr.mxu0 0.0
    %118 = vmatpush1.msra.mxu0 %v79
    %119 = vmatprep.subr.mxu0 0.0
    %120 = vmatpush1.msra.mxu0 %v80
    %121 = vmatprep.subr.mxu0 0.0
    %122 = vmatpush1.msra.mxu0 %v81
    %123 = vmatprep.subr.mxu0 0.0
    %124 = vmatpush1.msra.mxu0 %v82
    %125 = vmatprep.subr.mxu0 0.0
    %126 = vmatpush1.msra.mxu0 %v83
    %127 = vmatprep.subr.mxu0 0.0
    %128 = vmatpush1.msra.mxu0 %v84
    %129 = vmatprep.subr.mxu0 0.0
    %130 = vmatpush1.msra.mxu0 %v85
    %131 = vmatprep.subr.mxu0 0.0
    %132 = vmatpush1.msra.mxu0 %v86
    %133 = vmatprep.subr.mxu0 0.0
    %134 = vmatpush1.msra.mxu0 %v87
    %135 = vmatprep.subr.mxu0 0.0
    %136 = vmatpush1.msra.mxu0 %v88
    %137 = vmatprep.subr.mxu0 0.0
    %138 = vmatpush1.msra.mxu0 %v89
    %139 = vmatprep.subr.mxu0 0.0
    %140 = vmatpush1.msra.mxu0 %v90
    %141 = vmatprep.subr.mxu0 0.0
    %142 = vmatpush1.msra.mxu0 %v91
    %143 = vmatprep.subr.mxu0 0.0
    %144 = vmatpush1.msra.mxu0 %v92
    %145 = vmatprep.subr.mxu0 0.0
    %146 = vmatpush1.msra.mxu0 %v93
    %147 = vmatprep.subr.mxu0 0.0
    %148 = vmatpush1.msra.mxu0 %v94
    %149 = vmatprep.subr.mxu0 0.0
    %150 = vmatpush1.msra.mxu0 %v95
    %151 = vmatprep.subr.mxu0 0.0
    %152 = vmatpush1.msra.mxu0 %v96
    %153 = vmatprep.subr.mxu0 0.0
    %154 = vmatpush1.msra.mxu0 %v97
    %155 = vmatprep.subr.mxu0 0.0
    %156 = vmatpush1.msra.mxu0 %v98
    %157 = vmatprep.subr.mxu0 0.0
    %158 = vmatpush1.msra.mxu0 %v99
    %159 = vmatprep.subr.mxu0 0.0
    %160 = vmatpush1.msra.mxu0 %v100
    %161 = vmatprep.subr.mxu0 0.0
    %162 = vmatpush1.msra.mxu0 %v101
    %163 = vmatprep.subr.mxu0 0.0
    %164 = vmatpush1.msra.mxu0 %v102
    %165 = vmatprep.subr.mxu0 0.0
    %166 = vmatpush1.msra.mxu0 %v103
    %167 = vmatprep.subr.mxu0 0.0
    %168 = vmatpush1.msra.mxu0 %v104
    %169 = vmatprep.mubr.f32.mxu0 %v72
    %170 = vmatmul.mubr.f32.gmra.mrb[0].mxu0 %v71
    %v171 = vpop.f32.mrb[0].mxu0
    %v172 = vadd.f32 0.0, %v171
    %v173 = vpop.f32.mrb[0].mxu0
    %174 = vdwg.mxu0
    %v175 = vmax.f32 %v172, 0.0
    %v176 = vld [vmem:[#allocation7] sm:$0xff]
    %v177 = vld [vmem:[#allocation7 + $0x8] sm:$0xff]
    %v178 = vld [vmem:[#allocation7 + $0x10] sm:$0xff]
    %v179 = vld [vmem:[#allocation7 + $0x18] sm:$0xff]
    %v180 = vld [vmem:[#allocation7 + $0x20] sm:$0xff]
    %v181 = vld [vmem:[#allocation7 + $0x28] sm:$0xff]
    %v182 = vld [vmem:[#allocation7 + $0x30] sm:$0xff]
    %v183 = vld [vmem:[#allocation7 + $0x38] sm:$0xff]
    %v184 = vld [vmem:[#allocation7 + $0x40] sm:$0xff]
    %v185 = vld [vmem:[#allocation7 + $0x48] sm:$0xff]
    %v186 = vld [vmem:[#allocation7 + $0x50] sm:$0xff]
    %v187 = vld [vmem:[#allocation7 + $0x58] sm:$0xff]
    %v188 = vld [vmem:[#allocation7 + $0x60] sm:$0xff]
    %v189 = vld [vmem:[#allocation7 + $0x68] sm:$0xff]
    %v190 = vld [vmem:[#allocation7 + $0x70] sm:$0xff]
    %v191 = vld [vmem:[#allocation7 + $0x78] sm:$0xff]
    %192 = vmatprep.subr.mxu0 0.0
    %193 = vmatpush1.msra.mxu0 %v176
    %194 = vmatprep.subr.mxu0 0.0
    %195 = vmatpush1.msra.mxu0 %v177
    %196 = vmatprep.subr.mxu0 0.0
    %197 = vmatpush1.msra.mxu0 %v178
    %198 = vmatprep.subr.mxu0 0.0
    %199 = vmatpush1.msra.mxu0 %v179
    %200 = vmatprep.subr.mxu0 0.0
    %201 = vmatpush1.msra.mxu0 %v180
    %202 = vmatprep.subr.mxu0 0.0
    %203 = vmatpush1.msra.mxu0 %v181
    %204 = vmatprep.subr.mxu0 0.0
    %205 = vmatpush1.msra.mxu0 %v182
    %206 = vmatprep.subr.mxu0 0.0
    %207 = vmatpush1.msra.mxu0 %v183
    %208 = vmatprep.subr.mxu0 0.0
    %209 = vmatpush1.msra.mxu0 %v184
    %210 = vmatprep.subr.mxu0 0.0
    %211 = vmatpush1.msra.mxu0 %v185
    %212 = vmatprep.subr.mxu0 0.0
    %213 = vmatpush1.msra.mxu0 %v186
    %214 = vmatprep.subr.mxu0 0.0
    %215 = vmatpush1.msra.mxu0 %v187
    %216 = vmatprep.subr.mxu0 0.0
    %217 = vmatpush1.msra.mxu0 %v188
    %218 = vmatprep.subr.mxu0 0.0
    %219 = vmatpush1.msra.mxu0 %v189
    %220 = vmatprep.subr.mxu0 0.0
    %221 = vmatpush1.msra.mxu0 %v190
    %222 = vmatprep.subr.mxu0 0.0
    %223 = vmatpush1.msra.mxu0 %v191
    %224 = vmatprep.subr.mxu0 0.0
    %225 = vmatpush1.msra.mxu0 0.0
    %226 = vmatprep.subr.mxu0 0.0
    %227 = vmatpush1.msra.mxu0 0.0
    %228 = vmatprep.subr.mxu0 0.0
    %229 = vmatpush1.msra.mxu0 0.0
    %230 = vmatprep.subr.mxu0 0.0
    %231 = vmatpush1.msra.mxu0 0.0
    %232 = vmatprep.subr.mxu0 0.0
    %233 = vmatpush1.msra.mxu0 0.0
    %234 = vmatprep.subr.mxu0 0.0
    %235 = vmatpush1.msra.mxu0 0.0
    %236 = vmatprep.subr.mxu0 0.0
    %237 = vmatpush1.msra.mxu0 0.0
    %238 = vmatprep.subr.mxu0 0.0
    %239 = vmatpush1.msra.mxu0 0.0
    %240 = vmatprep.subr.mxu0 0.0
    %241 = vmatpush1.msra.mxu0 0.0
    %242 = vmatprep.subr.mxu0 0.0
    %243 = vmatpush1.msra.mxu0 0.0
    %244 = vmatprep.subr.mxu0 0.0
    %245 = vmatpush1.msra.mxu0 0.0
    %246 = vmatprep.subr.mxu0 0.0
    %247 = vmatpush1.msra.mxu0 0.0
    %248 = vmatprep.subr.mxu0 0.0
    %249 = vmatpush1.msra.mxu0 0.0
    %250 = vmatprep.subr.mxu0 0.0
    %251 = vmatpush1.msra.mxu0 0.0
    %252 = vmatprep.subr.mxu0 0.0
    %253 = vmatpush1.msra.mxu0 0.0
    %254 = vmatprep.subr.mxu0 0.0
    %255 = vmatpush1.msra.mxu0 0.0
    %256 = vmatprep.mubr.f32.mxu0 0.0
    %257 = vmatmul.mubr.f32.gmra.mrb[0].mxu0 %v175
    %v258 = vpop.f32.mrb[0].mxu0
    %v259 = vadd.f32 0.0, %v258
    %v260 = vpop.f32.mrb[0].mxu0
    %261 = vdwg.mxu0
    %v262 = vmax.f32 %v259, 0.0
    %v263 = vld [vmem:[#allocation8] sm:$0xff]
    %v264 = vld [vmem:[#allocation8 + $0x8] sm:$0xff]
    %v265 = vld [vmem:[#allocation8 + $0x10] sm:$0xff]
    %v266 = vld [vmem:[#allocation8 + $0x18] sm:$0xff]
    %v267 = vld [vmem:[#allocation8 + $0x20] sm:$0xff]
    %v268 = vld [vmem:[#allocation8 + $0x28] sm:$0xff]
    %v269 = vld [vmem:[#allocation8 + $0x30] sm:$0xff]
    %v270 = vld [vmem:[#allocation8 + $0x38] sm:$0xff]
    %v271 = vld [vmem:[#allocation8 + $0x40] sm:$0xff]
    %v272 = vld [vmem:[#allocation8 + $0x48] sm:$0xff]
    %v273 = vld [vmem:[#allocation8 + $0x50] sm:$0xff]
    %v274 = vld [vmem:[#allocation8 + $0x58] sm:$0xff]
    %v275 = vld [vmem:[#allocation8 + $0x60] sm:$0xff]
    %v276 = vld [vmem:[#allocation8 + $0x68] sm:$0xff]
    %v277 = vld [vmem:[#allocation8 + $0x70] sm:$0xff]
    %v278 = vld [vmem:[#allocation8 + $0x78] sm:$0xff]
    %279 = vmatprep.subr.mxu0 0.0
    %280 = vmatpush1.msra.mxu0 %v263
    %281 = vmatprep.subr.mxu0 0.0
    %282 = vmatpush1.msra.mxu0 %v264
    %283 = vmatprep.subr.mxu0 0.0
    %284 = vmatpush1.msra.mxu0 %v265
    %285 = vmatprep.subr.mxu0 0.0
    %286 = vmatpush1.msra.mxu0 %v266
    %287 = vmatprep.subr.mxu0 0.0
    %288 = vmatpush1.msra.mxu0 %v267
    %289 = vmatprep.subr.mxu0 0.0
    %290 = vmatpush1.msra.mxu0 %v268
    %291 = vmatprep.subr.mxu0 0.0
    %292 = vmatpush1.msra.mxu0 %v269
    %293 = vmatprep.subr.mxu0 0.0
    %294 = vmatpush1.msra.mxu0 %v270
    %295 = vmatprep.subr.mxu0 0.0
    %296 = vmatpush1.msra.mxu0 %v271
    %297 = vmatprep.subr.mxu0 0.0
    %298 = vmatpush1.msra.mxu0 %v272
    %299 = vmatprep.subr.mxu0 0.0
    %300 = vmatpush1.msra.mxu0 %v273
    %301 = vmatprep.subr.mxu0 0.0
    %302 = vmatpush1.msra.mxu0 %v274
    %303 = vmatprep.subr.mxu0 0.0
    %304 = vmatpush1.msra.mxu0 %v275
    %305 = vmatprep.subr.mxu0 0.0
    %306 = vmatpush1.msra.mxu0 %v276
    %307 = vmatprep.subr.mxu0 0.0
    %308 = vmatpush1.msra.mxu0 %v277
    %309 = vmatprep.subr.mxu0 0.0
    %310 = vmatpush1.msra.mxu0 %v278
    %311 = vmatprep.subr.mxu0 0.0
    %312 = vmatpush1.msra.mxu0 0.0
    %313 = vmatprep.subr.mxu0 0.0
    %314 = vmatpush1.msra.mxu0 0.0
    %315 = vmatprep.subr.mxu0 0.0
    %316 = vmatpush1.msra.mxu0 0.0
    %317 = vmatprep.subr.mxu0 0.0
    %318 = vmatpush1.msra.mxu0 0.0
    %319 = vmatprep.subr.mxu0 0.0
    %320 = vmatpush1.msra.mxu0 0.0
    %321 = vmatprep.subr.mxu0 0.0
    %322 = vmatpush1.msra.mxu0 0.0
    %323 = vmatprep.subr.mxu0 0.0
    %324 = vmatpush1.msra.mxu0 0.0
    %325 = vmatprep.subr.mxu0 0.0
    %326 = vmatpush1.msra.mxu0 0.0
    %327 = vmatprep.subr.mxu0 0.0
    %328 = vmatpush1.msra.mxu0 0.0
    %329 = vmatprep.subr.mxu0 0.0
    %330 = vmatpush1.msra.mxu0 0.0
    %331 = vmatprep.subr.mxu0 0.0
    %332 = vmatpush1.msra.mxu0 0.0
    %333 = vmatprep.subr.mxu0 0.0
    %334 = vmatpush1.msra.mxu0 0.0
    %335 = vmatprep.subr.mxu0 0.0
    %336 = vmatpush1.msra.mxu0 0.0
    %337 = vmatprep.subr.mxu0 0.0
    %338 = vmatpush1.msra.mxu0 0.0
    %339 = vmatprep.subr.mxu0 0.0
    %340 = vmatpush1.msra.mxu0 0.0
    %341 = vmatprep.subr.mxu0 0.0
    %342 = vmatpush1.msra.mxu0 0.0
    %343 = vmatprep.mubr.f32.mxu0 0.0
    %344 = vmatmul.mubr.f32.gmra.mrb[0].mxu0 %v262
    %v345 = vpop.f32.mrb[0].mxu0
    %v346 = vadd.f32 0.0, %v345
    %v347 = vpop.f32.mrb[0].mxu0
    %348 = vdwg.mxu0
    %349 = vst [vmem:[#allocation10] sm:$0xff] %v346
    // Predicated region
    $region34: #{tpu_custom_call.1} parent=1 // pred_check
      _
    $region35: #{tpu_custom_call.1} parent=1 // pred_check_branch
      %351 = sbr.rel (0) target = $region37
    $region36: #{tpu_custom_call.1} parent=1 // pred_region
      %s353 = ssub.s32 128, 128
      %354 = vsyncadd [#allocation4], %s353
      %s356 = sshll.u32 [#allocation10], 4
      %s357 = int_to_ptr.vmem [resolvable:$true] %s356
      %359 = dma.vmem_to_hbm [thread:$0]  %s357, 128, %s4, [#allocation4]
    $region37: #{tpu_custom_call.1} parent=1 // pred_fallthru
      _
    // Predicated region
    $region38: #{tpu_custom_call.1} parent=1 // pred_check
      _
    $region39: #{tpu_custom_call.1} parent=1 // pred_check_branch
      %361 = sbr.rel (0) target = $region41
    $region40: #{tpu_custom_call.1} parent=1 // pred_region
      %362 = dma.done [#allocation4], 128
    $region41: #{tpu_custom_call.1} parent=1 // pred_fallthru
      _
    %363 = vsyncpa [#allocation3], 1
    %364 = vsyncpa [#allocation6], 1
    %365 = vsyncpa [#allocation9], 1
    %366 = vsyncpa [#allocation4], 1

</llo_original>
